<compile_context>
chip_gen: v7x
topology: tpu7x:2x2x1
jax: 0.10.0
libtpu: 0.0.40
codegen_flags: <defaults>
</compile_context>

<pallas_src>
import jax
import jax.numpy as jnp
from jax.experimental import pallas as pl
from jax.experimental.pallas import tpu as pltpu


def _round_up(x, m):
    return ((x + m - 1) // m) * m


def _mlp_kernel(x_ref, w1_ref, b1_ref, w2_ref, b2_ref, wf_ref, bf_ref, o_ref):
    """Fused 2-hidden-layer MLP over one tile of rows.

    x_ref : (tile_n, E)   original dtype (f32/bf16); cast to bf16 in-kernel
    w1    : (E,  H1) bf16, b1: (1, H1) f32
    w2    : (H1, H2) bf16, b2: (1, H2) f32
    wf    : (H2, T)  bf16, bf: (1, T)  f32
    o_ref : (tile_n, T)  T-wide output tile (masked stores are fine; HBM-bound kernel)
    """
    # Cast on the VPU inside the kernel -- avoids a separate wrapper-level cast pass.
    x = x_ref[...].astype(jnp.bfloat16)

    # hidden layer 1 + ReLU (bf16 MXU matmul, f32 accumulate, f32 epilogue)
    h = jnp.dot(x, w1_ref[...], preferred_element_type=jnp.float32) + b1_ref[...]
    h = jnp.maximum(h, 0.0).astype(jnp.bfloat16)

    # hidden layer 2 + ReLU
    h = jnp.dot(h, w2_ref[...], preferred_element_type=jnp.float32) + b2_ref[...]
    h = jnp.maximum(h, 0.0).astype(jnp.bfloat16)

    # TODO(synk): dropout is identity at inference time; training-mode stochastic
    # dropout (pltpu.prng_* mask) intentionally not implemented here.

    # final projection (f32 accumulate), cast to output dtype on store
    out = jnp.dot(h, wf_ref[...], preferred_element_type=jnp.float32) + bf_ref[...]
    o_ref[...] = out.astype(o_ref.dtype)


def decoder_net_forward(embeds, params, *, tile_n=4096):
    """Equivalent of decoder_net.forward(embeds) -> pred ('main' head of ents_net).

    embeds: [batch, seq_len, num_cluster_levels, embed_size]
    returns [batch, seq_len, num_cluster_levels, num_ent_types], dtype of embeds.
    """
    w1, b1, w2, b2, wf, bf = params
    B, S, L, E = embeds.shape
    H1 = w1.shape[1]
    H2 = w2.shape[1]
    T = wf.shape[1]

    x2d = embeds.reshape(-1, E)
    N = x2d.shape[0]

    # Effective row tile: as large as requested (4096 default amortizes the
    # ~0.35 us/step overhead and still fits v7x's 64 MiB VMEM), but no larger than
    # needed.  Multiple of 16 so bf16/f32 sublane packing constraints always hold.
    tile_n_eff = _round_up(min(tile_n, _round_up(N, 16)), 16)
    grid = (pl.cdiv(N, tile_n_eff),)  # partial last block handled by Pallas masking

    # bf16 MXU weights; biases stay f32 for the f32 epilogue.  No lane padding of
    # the final projection: the output array is T-wide.
    w1b = w1.astype(jnp.bfloat16)
    w2b = w2.astype(jnp.bfloat16)
    wfb = wf.astype(jnp.bfloat16)
    b1f = b1.astype(jnp.float32)
    b2f = b2.astype(jnp.float32)
    bff = bf.astype(jnp.float32)

    # Small weights/biases: one full-extent block each, constant index_map ->
    # VMEM-resident across all row tiles (no per-step re-DMA).
    # (pl.Buffered(1) single-buffering considered but skipped: ~30 KB total, moot.)
    full = lambda arr: pl.BlockSpec(arr.shape, lambda i: (0,) * arr.ndim)

    # Advisory cost hint for XLA scheduling around this bandwidth-bound kernel.
    weight_bytes = sum(int(a.size) * a.dtype.itemsize
                       for a in (w1b, b1f, w2b, b2f, wfb, bff))
    cost = pl.CostEstimate(
        flops=2 * N * (E * H1 + H1 * H2 + H2 * T),
        transcendentals=0,
        bytes_accessed=N * E * x2d.dtype.itemsize
        + N * T * embeds.dtype.itemsize
        + weight_bytes,
    )

    out2d = pl.pallas_call(
        _mlp_kernel,
        out_shape=jax.ShapeDtypeStruct((N, T), embeds.dtype),
        grid_spec=pltpu.PrefetchScalarGridSpec(
            num_scalar_prefetch=0,
            grid=grid,
            in_specs=[
                pl.BlockSpec((tile_n_eff, E), lambda i: (i, 0)),
                full(w1b), full(b1f), full(w2b), full(b2f), full(wfb), full(bff),
            ],
            out_specs=pl.BlockSpec((tile_n_eff, T), lambda i: (i, 0)),
        ),
        compiler_params=pltpu.CompilerParams(
            dimension_semantics=("parallel",),  # megacore row-sharding on v7x
        ),
        cost_estimate=cost,
    )(x2d, w1b, b1f, w2b, b2f, wfb, bff)

    return out2d.reshape(B, S, L, T)


def init_params(key, embed_size, hidden_nodes, num_ent_types, init_std=0.02,
                dtype=jnp.float32):
    """Deterministic init mirroring decoder_net.__init__:
       w_init = ('normal', init_std), b_init = ('constant', init_std),
       f_w_init = ('normal', init_std), f_b_init = ('constant', 0).
    """
    h1, h2 = hidden_nodes
    k1, k2, k3 = jax.random.split(key, 3)
    w1 = (jax.random.normal(k1, (embed_size, h1)) * init_std).astype(dtype)
    b1 = jnp.full((1, h1), init_std, dtype=dtype)
    w2 = (jax.random.normal(k2, (h1, h2)) * init_std).astype(dtype)
    b2 = jnp.full((1, h2), init_std, dtype=dtype)
    wf = (jax.random.normal(k3, (h2, num_ent_types)) * init_std).astype(dtype)
    bf = jnp.zeros((1, num_ent_types), dtype=dtype)
    return (w1, b1, w2, b2, wf, bf)


def _reference_f32(embeds, params):
    """Pure-f32 JAX reference (module semantics)."""
    w1, b1, w2, b2, wf, bf = params
    h = jnp.maximum(embeds @ w1 + b1[0], 0.0)
    h = jnp.maximum(h @ w2 + b2[0], 0.0)
    return h @ wf + bf[0]


def _reference_bf16(embeds, params):
    """Reference mirroring the kernel's bf16-MXU / f32-accumulate numerics."""
    w1, b1, w2, b2, wf, bf = params
    x = embeds.astype(jnp.bfloat16)
    h = jnp.dot(x, w1.astype(jnp.bfloat16), preferred_element_type=jnp.float32) + b1[0]
    h = jnp.maximum(h, 0.0).astype(jnp.bfloat16)
    h = jnp.dot(h, w2.astype(jnp.bfloat16), preferred_element_type=jnp.float32) + b2[0]
    h = jnp.maximum(h, 0.0).astype(jnp.bfloat16)
    return jnp.dot(h, wf.astype(jnp.bfloat16), preferred_element_type=jnp.float32) + bf[0]


if __name__ == "__main__":
    embed_size = 32
    hidden_nodes = (64, 64)
    num_ent_types = 8

    key = jax.random.PRNGKey(0)
    k_x, k_p, k_x2 = jax.random.split(key, 3)
    params = init_params(k_p, embed_size, hidden_nodes, num_ent_types)

    # Case 1: tiny demo shapes -> collapses to a single full-extent block (grid=(1,)).
    batch, seq_len, levels = 2, 8, 2
    embeds = jax.random.normal(k_x, (batch, seq_len, levels, embed_size),
                               dtype=jnp.float32)
    pred = jax.block_until_ready(decoder_net_forward(embeds, params))
    assert pred.shape == (batch, seq_len, levels, num_ent_types)
    assert jnp.allclose(pred, _reference_bf16(embeds, params), atol=1e-4, rtol=1e-3)
    assert jnp.allclose(pred, _reference_f32(embeds, params), atol=5e-3, rtol=5e-2)

    # Case 2: N = 300 rows with tile=256 -> exercises the Pallas partial last-block
    # masking path (no wrapper-side jnp.pad), grid=(2,).
    b2_, s2_, l2_ = 3, 50, 2
    embeds2 = jax.random.normal(k_x2, (b2_, s2_, l2_, embed_size), dtype=jnp.float32)
    pred2 = jax.block_until_ready(decoder_net_forward(embeds2, params, tile_n=256))
    assert pred2.shape == (b2_, s2_, l2_, num_ent_types)
    assert jnp.allclose(pred2, _reference_bf16(embeds2, params), atol=1e-4, rtol=1e-3)

    print("KERNEL_OK")
</pallas_src>

<mosaic_0001>
module attributes {stable_mosaic.version = 11 : i64} {
  func.func @_mlp_kernel(%arg0: i32, %arg1: memref<32x32xf32, #tpu.memory_space<vmem>>, %arg2: memref<32x64xbf16, #tpu.memory_space<vmem>>, %arg3: memref<1x64xf32, #tpu.memory_space<vmem>>, %arg4: memref<64x64xbf16, #tpu.memory_space<vmem>>, %arg5: memref<1x64xf32, #tpu.memory_space<vmem>>, %arg6: memref<64x8xbf16, #tpu.memory_space<vmem>>, %arg7: memref<1x8xf32, #tpu.memory_space<vmem>>, %arg8: memref<32x8xf32, #tpu.memory_space<vmem>>) attributes {dimension_semantics = [#tpu.dimension_semantics<parallel>], iteration_bounds = array<i64: 1>, scalar_prefetch = 0 : i64, scratch_operands = 0 : i64, tpu.core_type = #tpu.core_type<tc>, window_params = [{transform_indices = @transform_0, window_bounds = array<i64: 32, 32>}, {pipeline_mode = #tpu.pipeline_mode<synchronous>, transform_indices = @transform_1, window_bounds = array<i64: 32, 64>}, {pipeline_mode = #tpu.pipeline_mode<synchronous>, transform_indices = @transform_2, window_bounds = array<i64: 1, 64>}, {pipeline_mode = #tpu.pipeline_mode<synchronous>, transform_indices = @transform_3, window_bounds = array<i64: 64, 64>}, {pipeline_mode = #tpu.pipeline_mode<synchronous>, transform_indices = @transform_4, window_bounds = array<i64: 1, 64>}, {pipeline_mode = #tpu.pipeline_mode<synchronous>, transform_indices = @transform_5, window_bounds = array<i64: 64, 8>}, {pipeline_mode = #tpu.pipeline_mode<synchronous>, transform_indices = @transform_6, window_bounds = array<i64: 1, 8>}, {transform_indices = @transform_7, window_bounds = array<i64: 32, 8>}]} {
    %c0 = arith.constant 0 : index
    %c0_0 = arith.constant 0 : index
    %0 = vector.load %arg1[%c0, %c0_0] : memref<32x32xf32, #tpu.memory_space<vmem>>, vector<32x32xf32>
    %1 = arith.truncf %0 : vector<32x32xf32> to vector<32x32xbf16>
    %c0_1 = arith.constant 0 : index
    %c0_2 = arith.constant 0 : index
    %2 = vector.load %arg2[%c0_1, %c0_2] : memref<32x64xbf16, #tpu.memory_space<vmem>>, vector<32x64xbf16>
    %cst = arith.constant dense<0.000000e+00> : vector<32x64xf32>
    %3 = tpu.matmul %1, %2, %cst {dimension_numbers = #tpu.dot_dimension_numbers<[1], [0], [0], [1], [0, 0, 1, 1], [], []>} : vector<32x32xbf16>, vector<32x64xbf16>, vector<32x64xf32> -> vector<32x64xf32>
    %c0_3 = arith.constant 0 : index
    %c0_4 = arith.constant 0 : index
    %4 = vector.load %arg3[%c0_3, %c0_4] : memref<1x64xf32, #tpu.memory_space<vmem>>, vector<1x64xf32>
    %5 = vector.broadcast %4 : vector<1x64xf32> to vector<32x64xf32>
    %6 = arith.addf %3, %5 : vector<32x64xf32>
    %cst_5 = arith.constant 0.000000e+00 : f32
    %7 = vector.broadcast %cst_5 : f32 to vector<32x64xf32>
    %8 = arith.maximumf %6, %7 : vector<32x64xf32>
    %9 = arith.truncf %8 : vector<32x64xf32> to vector<32x64xbf16>
    %c0_6 = arith.constant 0 : index
    %c0_7 = arith.constant 0 : index
    %10 = vector.load %arg4[%c0_6, %c0_7] : memref<64x64xbf16, #tpu.memory_space<vmem>>, vector<64x64xbf16>
    %cst_8 = arith.constant dense<0.000000e+00> : vector<32x64xf32>
    %11 = tpu.matmul %9, %10, %cst_8 {dimension_numbers = #tpu.dot_dimension_numbers<[1], [0], [0], [1], [0, 0, 1, 1], [], []>} : vector<32x64xbf16>, vector<64x64xbf16>, vector<32x64xf32> -> vector<32x64xf32>
    %c0_9 = arith.constant 0 : index
    %c0_10 = arith.constant 0 : index
    %12 = vector.load %arg5[%c0_9, %c0_10] : memref<1x64xf32, #tpu.memory_space<vmem>>, vector<1x64xf32>
    %13 = vector.broadcast %12 : vector<1x64xf32> to vector<32x64xf32>
    %14 = arith.addf %11, %13 : vector<32x64xf32>
    %cst_11 = arith.constant 0.000000e+00 : f32
    %15 = vector.broadcast %cst_11 : f32 to vector<32x64xf32>
    %16 = arith.maximumf %14, %15 : vector<32x64xf32>
    %17 = arith.truncf %16 : vector<32x64xf32> to vector<32x64xbf16>
    %c0_12 = arith.constant 0 : index
    %c0_13 = arith.constant 0 : index
    %18 = vector.load %arg6[%c0_12, %c0_13] : memref<64x8xbf16, #tpu.memory_space<vmem>>, vector<64x8xbf16>
    %cst_14 = arith.constant dense<0.000000e+00> : vector<32x8xf32>
    %19 = tpu.matmul %17, %18, %cst_14 {dimension_numbers = #tpu.dot_dimension_numbers<[1], [0], [0], [1], [0, 0, 1, 1], [], []>} : vector<32x64xbf16>, vector<64x8xbf16>, vector<32x8xf32> -> vector<32x8xf32>
    %c0_15 = arith.constant 0 : index
    %c0_16 = arith.constant 0 : index
    %20 = vector.load %arg7[%c0_15, %c0_16] : memref<1x8xf32, #tpu.memory_space<vmem>>, vector<1x8xf32>
    %21 = vector.broadcast %20 : vector<1x8xf32> to vector<32x8xf32>
    %22 = arith.addf %19, %21 : vector<32x8xf32>
    %c0_17 = arith.constant 0 : index
    %c0_18 = arith.constant 0 : index
    %23 = vector.load %arg8[%c0_17, %c0_18] : memref<32x8xf32, #tpu.memory_space<vmem>>, vector<32x8xf32>
    tpu.vector_store %arg8[%c0_17, %c0_18], %22 {strides = array<i32>} : memref<32x8xf32, #tpu.memory_space<vmem>>, vector<32x8xf32>,
    return
  }
  func.func @transform_0(%arg0: i32) -> (i32, i32) {
    %c0_i32 = arith.constant 0 : i32
    %c0_i32_0 = arith.constant 0 : i32
    return %arg0, %c0_i32 : i32, i32
  }
  func.func @transform_1(%arg0: i32) -> (i32, i32) {
    %c0_i32 = arith.constant 0 : i32
    %c0_i32_0 = arith.constant 0 : i32
    %c0_i32_1 = arith.constant 0 : i32
    return %c0_i32, %c0_i32_0 : i32, i32
  }
  func.func @transform_2(%arg0: i32) -> (i32, i32) {
    %c0_i32 = arith.constant 0 : i32
    %c0_i32_0 = arith.constant 0 : i32
    %c0_i32_1 = arith.constant 0 : i32
    return %c0_i32, %c0_i32_0 : i32, i32
  }
  func.func @transform_3(%arg0: i32) -> (i32, i32) {
    %c0_i32 = arith.constant 0 : i32
    %c0_i32_0 = arith.constant 0 : i32
    %c0_i32_1 = arith.constant 0 : i32
    return %c0_i32, %c0_i32_0 : i32, i32
  }
  func.func @transform_4(%arg0: i32) -> (i32, i32) {
    %c0_i32 = arith.constant 0 : i32
    %c0_i32_0 = arith.constant 0 : i32
    %c0_i32_1 = arith.constant 0 : i32
    return %c0_i32, %c0_i32_0 : i32, i32
  }
  func.func @transform_5(%arg0: i32) -> (i32, i32) {
    %c0_i32 = arith.constant 0 : i32
    %c0_i32_0 = arith.constant 0 : i32
    %c0_i32_1 = arith.constant 0 : i32
    return %c0_i32, %c0_i32_0 : i32, i32
  }
  func.func @transform_6(%arg0: i32) -> (i32, i32) {
    %c0_i32 = arith.constant 0 : i32
    %c0_i32_0 = arith.constant 0 : i32
    %c0_i32_1 = arith.constant 0 : i32
    return %c0_i32, %c0_i32_0 : i32, i32
  }
  func.func @transform_7(%arg0: i32) -> (i32, i32) {
    %c0_i32 = arith.constant 0 : i32
    %c0_i32_0 = arith.constant 0 : i32
    return %arg0, %c0_i32 : i32, i32
  }
}

</mosaic_0001>

<llo_original>
// kernel: tpu_custom_call.1
$region0: #{tpu_custom_call.1}
  #allocation0 [shape = 'u32[]', space=smem, size = 0x4, offset = 0x4, fixed_abs, tag = 'smem constant byte address 0x4 - core index']
  #allocation1 [shape = 'u32[144,128]{1,0:T(1,128)}', space=vmem, size = 0x12000, scoped, tag = 'internal scratch']
  %s0 = inlined_call_operand.vmem [shape: f32[32,32], index: 0, kind: input, shape index: {}]
  %s1 = inlined_call_operand.hbm [shape: bf16[32,64], index: 1, kind: input, shape index: {}]
  %s2 = inlined_call_operand.vmem [shape: f32[1,64], index: 2, kind: input, shape index: {}]
  %s3 = inlined_call_operand.hbm [shape: bf16[64,64], index: 3, kind: input, shape index: {}]
  %s4 = inlined_call_operand.vmem [shape: f32[1,64], index: 4, kind: input, shape index: {}]
  %s5 = inlined_call_operand.vmem [shape: bf16[64,8], index: 5, kind: input, shape index: {}]
  %s6 = inlined_call_operand.vmem [shape: f32[1,8], index: 6, kind: input, shape index: {}]
  %s7 = inlined_call_operand.vmem [shape: f32[32,8], index: 7, kind: output, shape index: {}]
  %s8 = sld [smem:[#allocation0]]
  $region46: #{tpu_custom_call.1} parent=0
    _
  %s10 = ssub.s32 1, %s8
  %s11 = scalar_select 0, %s10, %s8
  $region1: #{tpu_custom_call.1} parent=0
    #allocation2 [shape = 'u8[8192]{0}', space=vmem, size = 0x2000, scoped, tag = 'input window, operand 1, single buffered']
    #allocation3 [shape = 's32[1]{0}', space=sflag, size = 0x4, scoped, tag = 'scoped memory for tpu_custom_call.1']
    #allocation4 [shape = 'u8[16384]{0}', space=vmem, size = 0x4000, scoped, tag = 'input window, operand 3, single buffered']
    #allocation5 [shape = 's32[1]{0}', space=sflag, size = 0x4, scoped, tag = 'scoped memory for tpu_custom_call.1']
    %12 = vsyncpa [#allocation3], 0
    %13 = vsyncpa [#allocation5], 0
    // Predicated region
    $region2: #{tpu_custom_call.1} parent=1 // pred_check
      _
    $region3: #{tpu_custom_call.1} parent=1 // pred_check_branch
      %15 = sbr.rel (0) target = $region5
    $region4: #{tpu_custom_call.1} parent=1 // pred_region
      _
    $region5: #{tpu_custom_call.1} parent=1 // pred_fallthru
      _
    // Predicated region
    $region6: #{tpu_custom_call.1} parent=1 // pred_check
      _
    $region7: #{tpu_custom_call.1} parent=1 // pred_check_branch
      %17 = sbr.rel (0) target = $region9
    $region8: #{tpu_custom_call.1} parent=1 // pred_region
      %s19 = ssub.s32 256, 256
      %20 = vsyncadd [#allocation3], %s19
      %s21 = sshll.u32 [#allocation2], 4
      %s22 = int_to_ptr.vmem [resolvable:$true] %s21
      %27 = dma.hbm_to_vmem [thread:$0]  %s1, 256, %s22, [#allocation3], 64, 64, 4
    $region9: #{tpu_custom_call.1} parent=1 // pred_fallthru
      _
    // Predicated region
    $region10: #{tpu_custom_call.1} parent=1 // pred_check
      _
    $region11: #{tpu_custom_call.1} parent=1 // pred_check_branch
      %29 = sbr.rel (0) target = $region13
    $region12: #{tpu_custom_call.1} parent=1 // pred_region
      _
    $region13: #{tpu_custom_call.1} parent=1 // pred_fallthru
      _
    // Predicated region
    $region14: #{tpu_custom_call.1} parent=1 // pred_check
      _
    $region15: #{tpu_custom_call.1} parent=1 // pred_check_branch
      %31 = sbr.rel (0) target = $region17
    $region16: #{tpu_custom_call.1} parent=1 // pred_region
      %s33 = ssub.s32 512, 512
      %34 = vsyncadd [#allocation5], %s33
      %s35 = sshll.u32 [#allocation4], 4
      %s36 = int_to_ptr.vmem [resolvable:$true] %s35
      %41 = dma.hbm_to_vmem [thread:$0]  %s3, 512, %s36, [#allocation5], 64, 64, 4
    $region17: #{tpu_custom_call.1} parent=1 // pred_fallthru
      _
    // Predicated region
    $region18: #{tpu_custom_call.1} parent=1 // pred_check
      _
    $region19: #{tpu_custom_call.1} parent=1 // pred_check_branch
      %43 = sbr.rel (0) target = $region21
    $region20: #{tpu_custom_call.1} parent=1 // pred_region
      _
    $region21: #{tpu_custom_call.1} parent=1 // pred_fallthru
      _
    // Predicated region
    $region22: #{tpu_custom_call.1} parent=1 // pred_check
      _
    $region23: #{tpu_custom_call.1} parent=1 // pred_check_branch
      %45 = sbr.rel (0) target = $region25
    $region24: #{tpu_custom_call.1} parent=1 // pred_region
      _
    $region25: #{tpu_custom_call.1} parent=1 // pred_fallthru
      _
    // Predicated region
    $region26: #{tpu_custom_call.1} parent=1 // pred_check
      _
    $region27: #{tpu_custom_call.1} parent=1 // pred_check_branch
      %47 = sbr.rel (0) target = $region29
    $region28: #{tpu_custom_call.1} parent=1 // pred_region
      _
    $region29: #{tpu_custom_call.1} parent=1 // pred_fallthru
      _
    // Predicated region
    $region30: #{tpu_custom_call.1} parent=1 // pred_check
      _
    $region31: #{tpu_custom_call.1} parent=1 // pred_check_branch
      %49 = sbr.rel (0) target = $region33
    $region32: #{tpu_custom_call.1} parent=1 // pred_region
      %50 = dma.done [#allocation3], 256
    $region33: #{tpu_custom_call.1} parent=1 // pred_fallthru
      _
    // Predicated region
    $region34: #{tpu_custom_call.1} parent=1 // pred_check
      _
    $region35: #{tpu_custom_call.1} parent=1 // pred_check_branch
      %52 = sbr.rel (0) target = $region37
    $region36: #{tpu_custom_call.1} parent=1 // pred_region
      %53 = dma.done [#allocation5], 512
    $region37: #{tpu_custom_call.1} parent=1 // pred_fallthru
      _
    %v55 = vld [vmem:[%s0] sm:$0xff]
    %v56 = vld [vmem:[%s0 + $0x8] sm:$0xff]
    %v57 = vld [vmem:[%s0 + $0x10] sm:$0xff]
    %v58 = vld [vmem:[%s0 + $0x18] sm:$0xff]
    %v59 = vpack.c.bf16 %v56, %v55
    %v60 = vpack.c.bf16 %v58, %v57
    %v61 = vld [vmem:[#allocation2] sm:$0xf]
    %v62 = vld [vmem:[#allocation2 + $0x4] sm:$0xf]
    %v63 = vld [vmem:[#allocation2 + $0x8] sm:$0xf]
    %v64 = vld [vmem:[#allocation2 + $0xc] sm:$0xf]
    %v65 = vld [vmem:[%s2] sm:$0x1]
    %v67 = vlaneseq
    %v68 = vshrl.u32 %v67, 7
    %v69 = vsub.s32 0, %v68
    %v70 = vrot.slane %v65, %v69
    %v76 = vunpack.c.l.b16 %v61
    %v77 = vunpack.c.l.b16 %v62
    %v78 = vunpack.c.l.b16 %v63
    %v79 = vunpack.c.l.b16 %v64
    %v80 = vpack.c.b16 %v77, %v76
    %v81 = vpack.c.b16 %v79, %v78
    %vm84 = vcmask 261120
    %v86 = vsel %vm84, %v59, 0
    %v89 = vsel %vm84, %v60, 0
    %91 = vmatprep.subr.bf16.mxu0 0
    %92 = vmatpush1.bf16.msra.mxu0 %v80
    %93 = vmatprep.subr.bf16.mxu0 0
    %94 = vmatpush1.bf16.msra.mxu0 %v81
    %95 = vmatprep.subr.bf16.mxu0 0
    %96 = vmatpush1.bf16.msra.mxu0 0
    %97 = vmatprep.subr.bf16.mxu0 0
    %98 = vmatpush1.bf16.msra.mxu0 0
    %99 = vmatprep.subr.bf16.mxu0 0
    %100 = vmatpush1.bf16.msra.mxu0 0
    %101 = vmatprep.subr.bf16.mxu0 0
    %102 = vmatpush1.bf16.msra.mxu0 0
    %103 = vmatprep.subr.bf16.mxu0 0
    %104 = vmatpush1.bf16.msra.mxu0 0
    %105 = vmatprep.subr.bf16.mxu0 0
    %106 = vmatpush1.bf16.msra.mxu0 0
    %107 = vmatprep.subr.bf16.mxu0 0
    %108 = vmatpush1.bf16.msra.mxu0 0
    %109 = vmatprep.subr.bf16.mxu0 0
    %110 = vmatpush1.bf16.msra.mxu0 0
    %111 = vmatprep.subr.bf16.mxu0 0
    %112 = vmatpush1.bf16.msra.mxu0 0
    %113 = vmatprep.subr.bf16.mxu0 0
    %114 = vmatpush1.bf16.msra.mxu0 0
    %115 = vmatprep.subr.bf16.mxu0 0
    %116 = vmatpush1.bf16.msra.mxu0 0
    %117 = vmatprep.subr.bf16.mxu0 0
    %118 = vmatpush1.bf16.msra.mxu0 0
    %119 = vmatprep.subr.bf16.mxu0 0
    %120 = vmatpush1.bf16.msra.mxu0 0
    %121 = vmatprep.subr.bf16.mxu0 0
    %122 = vmatpush1.bf16.msra.mxu0 0
    %123 = vmatprep.mubr.bf16.mxu0 0
    %124 = vmatmul.mubr.bf16.gmra.mrb[0].mxu0 %v86
    %v125 = vpop.f32.mrb[0].mxu0
    %v126 = vadd.f32 %v70, %v125
    %v127 = vpop.f32.mrb[0].mxu0
    %v128 = vpop.f32.mrb[0].mxu0
    %v129 = vadd.f32 %v70, %v128
    %v130 = vpop.f32.mrb[0].mxu0
    %131 = vmatprep.mubr.bf16.mxu0 0
    %132 = vmatmul.mubr.bf16.gmra.mrb[0].mxu0 %v89
    %v133 = vpop.f32.mrb[0].mxu0
    %v134 = vadd.f32 %v70, %v133
    %v135 = vpop.f32.mrb[0].mxu0
    %v136 = vpop.f32.mrb[0].mxu0
    %v137 = vadd.f32 %v70, %v136
    %v138 = vpop.f32.mrb[0].mxu0
    %139 = vdwg.mxu0
    %v140 = vmax.f32 %v126, 0.0
    %v141 = vmax.f32 %v129, 0.0
    %v142 = vmax.f32 %v134, 0.0
    %v143 = vmax.f32 %v137, 0.0
    %v144 = vpack.c.bf16 %v141, %v140
    %v145 = vpack.c.bf16 %v143, %v142
    %v146 = vld [vmem:[#allocation4] sm:$0xf]
    %v147 = vld [vmem:[#allocation4 + $0x4] sm:$0xf]
    %v148 = vld [vmem:[#allocation4 + $0x8] sm:$0xf]
    %v149 = vld [vmem:[#allocation4 + $0xc] sm:$0xf]
    %v150 = vld [vmem:[#allocation4 + $0x10] sm:$0xf]
    %v151 = vld [vmem:[#allocation4 + $0x14] sm:$0xf]
    %v152 = vld [vmem:[#allocation4 + $0x18] sm:$0xf]
    %v153 = vld [vmem:[#allocation4 + $0x1c] sm:$0xf]
    %v154 = vld [vmem:[%s4] sm:$0x1]
    %v156 = vlaneseq
    %v157 = vshrl.u32 %v156, 7
    %v158 = vsub.s32 0, %v157
    %v159 = vrot.slane %v154, %v158
    %v169 = vunpack.c.l.b16 %v146
    %v170 = vunpack.c.l.b16 %v147
    %v171 = vunpack.c.l.b16 %v148
    %v172 = vunpack.c.l.b16 %v149
    %v173 = vunpack.c.l.b16 %v150
    %v174 = vunpack.c.l.b16 %v151
    %v175 = vunpack.c.l.b16 %v152
    %v176 = vunpack.c.l.b16 %v153
    %v177 = vpack.c.b16 %v170, %v169
    %v178 = vpack.c.b16 %v172, %v171
    %v179 = vpack.c.b16 %v174, %v173
    %v180 = vpack.c.b16 %v176, %v175
    %vm185 = vcmask 523264
    %v187 = vsel %vm185, %v144, 0
    %v190 = vsel %vm185, %v145, 0
    %192 = vmatprep.subr.bf16.mxu0 0
    %193 = vmatpush1.bf16.msra.mxu0 %v177
    %194 = vmatprep.subr.bf16.mxu0 0
    %195 = vmatpush1.bf16.msra.mxu0 %v178
    %196 = vmatprep.subr.bf16.mxu0 0
    %197 = vmatpush1.bf16.msra.mxu0 %v179
    %198 = vmatprep.subr.bf16.mxu0 0
    %199 = vmatpush1.bf16.msra.mxu0 %v180
    %200 = vmatprep.subr.bf16.mxu0 0
    %201 = vmatpush1.bf16.msra.mxu0 0
    %202 = vmatprep.subr.bf16.mxu0 0
    %203 = vmatpush1.bf16.msra.mxu0 0
    %204 = vmatprep.subr.bf16.mxu0 0
    %205 = vmatpush1.bf16.msra.mxu0 0
    %206 = vmatprep.subr.bf16.mxu0 0
    %207 = vmatpush1.bf16.msra.mxu0 0
    %208 = vmatprep.subr.bf16.mxu0 0
    %209 = vmatpush1.bf16.msra.mxu0 0
    %210 = vmatprep.subr.bf16.mxu0 0
    %211 = vmatpush1.bf16.msra.mxu0 0
    %212 = vmatprep.subr.bf16.mxu0 0
    %213 = vmatpush1.bf16.msra.mxu0 0
    %214 = vmatprep.subr.bf16.mxu0 0
    %215 = vmatpush1.bf16.msra.mxu0 0
    %216 = vmatprep.subr.bf16.mxu0 0
    %217 = vmatpush1.bf16.msra.mxu0 0
    %218 = vmatprep.subr.bf16.mxu0 0
    %219 = vmatpush1.bf16.msra.mxu0 0
    %220 = vmatprep.subr.bf16.mxu0 0
    %221 = vmatpush1.bf16.msra.mxu0 0
    %222 = vmatprep.subr.bf16.mxu0 0
    %223 = vmatpush1.bf16.msra.mxu0 0
    %224 = vmatprep.mubr.bf16.mxu0 0
    %225 = vmatmul.mubr.bf16.gmra.mrb[0].mxu0 %v187
    %v226 = vpop.f32.mrb[0].mxu0
    %v227 = vadd.f32 %v159, %v226
    %v228 = vpop.f32.mrb[0].mxu0
    %v229 = vpop.f32.mrb[0].mxu0
    %v230 = vadd.f32 %v159, %v229
    %v231 = vpop.f32.mrb[0].mxu0
    %232 = vmatprep.mubr.bf16.mxu0 0
    %233 = vmatmul.mubr.bf16.gmra.mrb[0].mxu0 %v190
    %v234 = vpop.f32.mrb[0].mxu0
    %v235 = vadd.f32 %v159, %v234
    %v236 = vpop.f32.mrb[0].mxu0
    %v237 = vpop.f32.mrb[0].mxu0
    %v238 = vadd.f32 %v159, %v237
    %v239 = vpop.f32.mrb[0].mxu0
    %240 = vdwg.mxu0
    %v241 = vmax.f32 %v227, 0.0
    %v242 = vmax.f32 %v230, 0.0
    %v243 = vmax.f32 %v235, 0.0
    %v244 = vmax.f32 %v238, 0.0
    %v245 = vpack.c.bf16 %v242, %v241
    %v246 = vpack.c.bf16 %v244, %v243
    %v247 = vld [vmem:[%s5] sm:$0xf]
    %v248 = vld [vmem:[%s5 + $0x4] sm:$0xf]
    %v249 = vld [vmem:[%s5 + $0x8] sm:$0xf]
    %v250 = vld [vmem:[%s5 + $0xc] sm:$0xf]
    %v251 = vld [vmem:[%s5 + $0x10] sm:$0xf]
    %v252 = vld [vmem:[%s5 + $0x14] sm:$0xf]
    %v253 = vld [vmem:[%s5 + $0x18] sm:$0xf]
    %v254 = vld [vmem:[%s5 + $0x1c] sm:$0xf]
    %v255 = vld [vmem:[%s6] sm:$0x1]
    %v257 = vlaneseq
    %v258 = vshrl.u32 %v257, 7
    %v259 = vsub.s32 0, %v258
    %v260 = vrot.slane %v255, %v259
    %v270 = vunpack.c.l.b16 %v247
    %v271 = vunpack.c.l.b16 %v248
    %v272 = vunpack.c.l.b16 %v249
    %v273 = vunpack.c.l.b16 %v250
    %v274 = vunpack.c.l.b16 %v251
    %v275 = vunpack.c.l.b16 %v252
    %v276 = vunpack.c.l.b16 %v253
    %v277 = vunpack.c.l.b16 %v254
    %v278 = vpack.c.b16 %v271, %v270
    %v279 = vpack.c.b16 %v273, %v272
    %v280 = vpack.c.b16 %v275, %v274
    %v281 = vpack.c.b16 %v277, %v276
    %v287 = vsel %vm185, %v245, 0
    %v290 = vsel %vm185, %v246, 0
    %292 = vmatprep.subr.bf16.mxu0 0
    %293 = vmatpush1.bf16.msra.mxu0 %v278
    %294 = vmatprep.subr.bf16.mxu0 0
    %295 = vmatpush1.bf16.msra.mxu0 %v279
    %296 = vmatprep.subr.bf16.mxu0 0
    %297 = vmatpush1.bf16.msra.mxu0 %v280
    %298 = vmatprep.subr.bf16.mxu0 0
    %299 = vmatpush1.bf16.msra.mxu0 %v281
    %300 = vmatprep.subr.bf16.mxu0 0
    %301 = vmatpush1.bf16.msra.mxu0 0
    %302 = vmatprep.subr.bf16.mxu0 0
    %303 = vmatpush1.bf16.msra.mxu0 0
    %304 = vmatprep.subr.bf16.mxu0 0
    %305 = vmatpush1.bf16.msra.mxu0 0
    %306 = vmatprep.subr.bf16.mxu0 0
    %307 = vmatpush1.bf16.msra.mxu0 0
    %308 = vmatprep.subr.bf16.mxu0 0
    %309 = vmatpush1.bf16.msra.mxu0 0
    %310 = vmatprep.subr.bf16.mxu0 0
    %311 = vmatpush1.bf16.msra.mxu0 0
    %312 = vmatprep.subr.bf16.mxu0 0
    %313 = vmatpush1.bf16.msra.mxu0 0
    %314 = vmatprep.subr.bf16.mxu0 0
    %315 = vmatpush1.bf16.msra.mxu0 0
    %316 = vmatprep.subr.bf16.mxu0 0
    %317 = vmatpush1.bf16.msra.mxu0 0
    %318 = vmatprep.subr.bf16.mxu0 0
    %319 = vmatpush1.bf16.msra.mxu0 0
    %320 = vmatprep.subr.bf16.mxu0 0
    %321 = vmatpush1.bf16.msra.mxu0 0
    %322 = vmatprep.subr.bf16.mxu0 0
    %323 = vmatpush1.bf16.msra.mxu0 0
    %324 = vmatprep.mubr.bf16.mxu0 0
    %325 = vmatmul.mubr.bf16.gmra.mrb[0].mxu0 %v287
    %v326 = vpop.f32.mrb[0].mxu0
    %v327 = vadd.f32 %v260, %v326
    %v328 = vpop.f32.mrb[0].mxu0
    %v329 = vpop.f32.mrb[0].mxu0
    %v330 = vadd.f32 %v260, %v329
    %v331 = vpop.f32.mrb[0].mxu0
    %332 = vmatprep.mubr.bf16.mxu0 0
    %333 = vmatmul.mubr.bf16.gmra.mrb[0].mxu0 %v290
    %v334 = vpop.f32.mrb[0].mxu0
    %v335 = vadd.f32 %v260, %v334
    %v336 = vpop.f32.mrb[0].mxu0
    %v337 = vpop.f32.mrb[0].mxu0
    %v338 = vadd.f32 %v260, %v337
    %v339 = vpop.f32.mrb[0].mxu0
    %340 = vdwg.mxu0
    %vm341 = vcmask 64512
    %342 = vst.msk [vmem:[%s7] sm:$0xff] %vm341, %v327
    %343 = vst.msk [vmem:[%s7 + $0x8] sm:$0xff] %vm341, %v330
    %344 = vst.msk [vmem:[%s7 + $0x10] sm:$0xff] %vm341, %v335
    %345 = vst.msk [vmem:[%s7 + $0x18] sm:$0xff] %vm341, %v338
    // Predicated region
    $region38: #{tpu_custom_call.1} parent=1 // pred_check
      _
    $region39: #{tpu_custom_call.1} parent=1 // pred_check_branch
      %347 = sbr.rel (0) target = $region41
    $region40: #{tpu_custom_call.1} parent=1 // pred_region
      _
    $region41: #{tpu_custom_call.1} parent=1 // pred_fallthru
      _
    // Predicated region
    $region42: #{tpu_custom_call.1} parent=1 // pred_check
      _
    $region43: #{tpu_custom_call.1} parent=1 // pred_check_branch
      %349 = sbr.rel (0) target = $region45
    $region44: #{tpu_custom_call.1} parent=1 // pred_region
      _
    $region45: #{tpu_custom_call.1} parent=1 // pred_fallthru
      _
    %350 = vsyncpa [#allocation3], 1
    %351 = vsyncpa [#allocation5], 1

</llo_original>
